<compile_context>
chip_gen: v7x
topology: tpu7x:2x2x1
jax: 0.10.0
libtpu: 0.0.40
codegen_flags: <defaults>
</compile_context>

<pallas_src>
import functools

import jax
import jax.numpy as jnp
from jax import lax
from jax.experimental import pallas as pl
from jax.experimental.pallas import tpu as pltpu

_LANES = 128
_ACC_ROWS = 64  # fixed accumulator height (multiple of 8); 64*128*4B = 32 KiB


def _mean_single_tile_kernel(x_ref, o_ref, *, inv_n):
    """Whole slab is one VMEM block: cast, reduce, scale."""
    o_ref[0, 0] = jnp.sum(x_ref[...].astype(jnp.float32)) * jnp.float32(inv_n)


def _mean_streaming_kernel(x_ref, o_ref, acc_ref, *, tile_rows, chunk_rows,
                           n_chunks, valid_rows, inv_n):
    """Streaming sum over large row tiles into a small vreg-resident accumulator."""
    i = pl.program_id(0)
    last = pl.num_programs(0) - 1

    @pl.when(i == 0)
    def _init():
        acc_ref[...] = jnp.zeros_like(acc_ref)

    # Hot path (interior tiles): pure vld + vadd stream.  The accumulator is
    # loaded/stored to VMEM once per grid step and carried in vregs across the
    # chunk loop, so there is no per-chunk accumulator ld/st traffic.
    @pl.when(i < last)
    def _interior():
        def body(j, acc):
            off = pl.multiple_of(j * chunk_rows, chunk_rows)
            return acc + x_ref[pl.ds(off, chunk_rows), :].astype(jnp.float32)

        acc_ref[...] = lax.fori_loop(0, n_chunks, body, acc_ref[...])

    # Last tile only: the block may overhang the array (unspecified VMEM in
    # the overhang), so mask rows >= valid_rows, then do the single cross-lane
    # reduction and write the scalar mean.
    @pl.when(i == last)
    def _tail():
        base = i * tile_rows
        row_iota = lax.broadcasted_iota(jnp.int32, (chunk_rows, _LANES), 0)

        def body(j, acc):
            off = pl.multiple_of(j * chunk_rows, chunk_rows)
            chunk = x_ref[pl.ds(off, chunk_rows), :].astype(jnp.float32)
            valid = (row_iota + (base + off)) < valid_rows
            return acc + jnp.where(valid, chunk, 0.0)

        acc = lax.fori_loop(0, n_chunks, body, acc_ref[...])
        o_ref[0, 0] = jnp.sum(acc) * jnp.float32(inv_n)


def base_loss_forward(x: jax.Array, *, tile_bytes: int = 8 * 1024 * 1024) -> jax.Array:
    """Scalar loss = mean(x), computed in a Pallas TPU kernel.

    x: tensor of any shape / float dtype (e.g. NCHW [B, C, H, W]).
    tile_bytes: per-DMA tile byte budget (byte-based, dtype-agnostic sizing).
    Returns a float32 scalar.
    """
    total_elems = int(x.size)
    inv_n = 1.0 / float(total_elems)

    flat = x.reshape(-1)  # free for contiguous inputs; stream native dtype
    if total_elems % _LANES != 0:
        # TODO(synk): minimal pad to the 128-lane granule; costs one HBM copy
        #             only for sizes not divisible by 128 (zero cost otherwise).
        flat = jnp.pad(flat, (0, _LANES - total_elems % _LANES))
    rows = flat.size // _LANES
    x2d = flat.reshape(rows, _LANES)  # lane-dense 2D slab (view, no copy)

    itemsize = x2d.dtype.itemsize
    row_bytes = _LANES * itemsize
    tile_bytes = min(int(tile_bytes), 16 * 1024 * 1024)  # VMEM headroom on all gens
    budget_rows = max(8, tile_bytes // row_bytes)  # byte-based: bf16 gets 2x rows

    cost = pl.CostEstimate(
        flops=total_elems, transcendentals=0,
        bytes_accessed=int(rows) * row_bytes + 4)

    if rows <= budget_rows:
        # Small/medium input: single block, single cross-lane reduce.
        vmem_limit = min(48 * 1024 * 1024, 2 * rows * row_bytes + 8 * 1024 * 1024)
        out = pl.pallas_call(
            functools.partial(_mean_single_tile_kernel, inv_n=inv_n),
            out_shape=jax.ShapeDtypeStruct((1, 1), jnp.float32),
            grid_spec=pltpu.PrefetchScalarGridSpec(
                num_scalar_prefetch=0,
                grid=(1,),
                in_specs=[pl.BlockSpec((rows, _LANES), lambda i: (0, 0))],
                out_specs=pl.BlockSpec(memory_space=pltpu.MemorySpace.SMEM),
            ),
            compiler_params=pltpu.CompilerParams(
                dimension_semantics=("arbitrary",),
                vmem_limit_bytes=vmem_limit,
            ),
            cost_estimate=cost,
        )(x2d)
        return out[0, 0]

    # Multi-tile streaming path: large tiles (multi-MiB DMAs) to amortize the
    # ~0.35us per-grid-step overhead, small fixed accumulator in VMEM scratch.
    tile_rows = (budget_rows // 8) * 8            # multiple of 8 sublanes
    chunk_rows = min(_ACC_ROWS, tile_rows)        # accumulator height
    tile_rows = (tile_rows // chunk_rows) * chunk_rows  # multiple of the chunk
    n_chunks = tile_rows // chunk_rows
    n_tiles = pl.cdiv(rows, tile_rows)
    vmem_limit = min(48 * 1024 * 1024,
                     2 * tile_rows * row_bytes + 8 * 1024 * 1024)

    kernel = functools.partial(
        _mean_streaming_kernel,
        tile_rows=tile_rows, chunk_rows=chunk_rows, n_chunks=n_chunks,
        valid_rows=rows, inv_n=inv_n)

    out = pl.pallas_call(
        kernel,
        out_shape=jax.ShapeDtypeStruct((1, 1), jnp.float32),
        grid_spec=pltpu.PrefetchScalarGridSpec(
            num_scalar_prefetch=0,
            grid=(n_tiles,),
            in_specs=[pl.BlockSpec((tile_rows, _LANES), lambda i: (i, 0))],
            out_specs=pl.BlockSpec(memory_space=pltpu.MemorySpace.SMEM),
            scratch_shapes=[pltpu.VMEM((chunk_rows, _LANES), jnp.float32)],
        ),
        compiler_params=pltpu.CompilerParams(
            dimension_semantics=("arbitrary",),  # shared accumulator -> serial axis
            vmem_limit_bytes=vmem_limit,
        ),
        cost_estimate=cost,
    )(x2d)
    return out[0, 0]


if __name__ == "__main__":
    key = jax.random.PRNGKey(0)
    k1, k2, k3 = jax.random.split(key, 3)

    # 1) Small NCHW input (EBM loss over image-like samples) -> single-tile path.
    x = jax.random.normal(k1, (2, 4, 16, 16), dtype=jnp.float32)
    loss = base_loss_forward(x)
    jax.block_until_ready(loss)
    ref = jnp.mean(x)
    assert jnp.allclose(loss, ref, atol=1e-5, rtol=1e-4), (loss, ref)

    # 2) Multi-tile streaming path with multi-chunk accumulation and a
    #    last-block overhang (520 rows, 256-row tiles -> 3 tiles, masked tail).
    x2 = jax.random.normal(k2, (1, 520, 128), dtype=jnp.float32)
    loss2 = base_loss_forward(x2, tile_bytes=128 * 1024)
    jax.block_until_ready(loss2)
    ref2 = jnp.mean(x2)
    assert jnp.allclose(loss2, ref2, atol=1e-5, rtol=1e-4), (loss2, ref2)

    # 3) bf16 input streamed in native dtype (byte-based tile sizing), f32 accum.
    x3 = jax.random.normal(k3, (4, 64, 128), dtype=jnp.bfloat16)
    loss3 = base_loss_forward(x3, tile_bytes=16 * 1024)
    jax.block_until_ready(loss3)
    ref3 = jnp.mean(x3.astype(jnp.float32))
    assert jnp.allclose(loss3, ref3, atol=1e-3, rtol=1e-3), (loss3, ref3)

    print("KERNEL_OK")
</pallas_src>

<mosaic_0001>
module attributes {stable_mosaic.version = 11 : i64} {
  func.func @_mean_single_tile_kernel(%arg0: i32, %arg1: memref<16x128xf32, #tpu.memory_space<vmem>>, %arg2: memref<1x1xf32, #tpu.memory_space<smem>>) attributes {dimension_semantics = [#tpu.dimension_semantics<arbitrary>], iteration_bounds = array<i64: 1>, scalar_prefetch = 0 : i64, scratch_operands = 0 : i64, tpu.core_type = #tpu.core_type<tc>, window_params = [{pipeline_mode = #tpu.pipeline_mode<synchronous>, transform_indices = @transform_0, window_bounds = array<i64: 16, 128>}, {transform_indices = @transform_1, window_bounds = array<i64: 1, 1>}]} {
    %c0 = arith.constant 0 : index
    %c0_0 = arith.constant 0 : index
    %0 = vector.load %arg1[%c0, %c0_0] : memref<16x128xf32, #tpu.memory_space<vmem>>, vector<16x128xf32>
    %1 = vector.shape_cast %0 : vector<16x128xf32> to vector<1x16x128xf32>
    %cst = arith.constant dense<0.000000e+00> : vector<1xf32>
    %2 = vector.multi_reduction <add>, %1, %cst [1, 2] : vector<1x16x128xf32> to vector<1xf32>
    %3 = vector.shape_cast %2 : vector<1xf32> to vector<1x1x1xf32>
    %4 = vector.extract %3[0, 0, 0] : f32 from vector<1x1x1xf32>
    %cst_1 = arith.constant 4.8828125E-4 : f32
    %5 = arith.mulf %4, %cst_1 : f32
    %c0_2 = arith.constant 0 : index
    %c0_3 = arith.constant 0 : index
    %6 = memref.load %arg2[%c0_2, %c0_3] : memref<1x1xf32, #tpu.memory_space<smem>>
    memref.store %5, %arg2[%c0_2, %c0_3] : memref<1x1xf32, #tpu.memory_space<smem>>
    return
  }
  func.func @transform_0(%arg0: i32) -> (i32, i32) {
    %c0_i32 = arith.constant 0 : i32
    %c0_i32_0 = arith.constant 0 : i32
    %c0_i32_1 = arith.constant 0 : i32
    return %c0_i32, %c0_i32_0 : i32, i32
  }
  func.func @transform_1(%arg0: i32) -> (i32, i32) {
    %c0_i32 = arith.constant 0 : i32
    %c0_i32_0 = arith.constant 0 : i32
    %c0_i32_1 = arith.constant 0 : i32
    return %c0_i32, %c0_i32_0 : i32, i32
  }
}

</mosaic_0001>

<llo_original>
// kernel: tpu_custom_call.1
$region0: #{tpu_custom_call.1}
  #allocation0 [shape = 'u32[]', space=smem, size = 0x4, offset = 0x4, fixed_abs, tag = 'smem constant byte address 0x4 - core index']
  #allocation1 [shape = 'u32[144,128]{1,0:T(1,128)}', space=vmem, size = 0x12000, scoped, tag = 'internal scratch']
  %s0 = inlined_call_operand.hbm [shape: f32[16,128], index: 0, kind: input, shape index: {}]
  %s1 = inlined_call_operand.hbm [shape: f32[1,1], index: 1, kind: output, shape index: {}]
  %s2 = sld [smem:[#allocation0]]
  $region18: #{tpu_custom_call.1} parent=0
    _
  %s4 = ssub.s32 1, %s2
  %s5 = scalar_select 0, %s4, %s2
  $region1: #{tpu_custom_call.1} parent=0
    #allocation2 [shape = 'u8[8192]{0}', space=vmem, size = 0x2000, scoped, tag = 'input window, operand 0, single buffered']
    #allocation3 [shape = 's32[1]{0}', space=sflag, size = 0x4, scoped, tag = 'scoped memory for tpu_custom_call.1']
    #allocation4 [shape = 's32[1]{0}', space=sflag, size = 0x4, scoped, tag = 'scoped memory for tpu_custom_call.1']
    #allocation5 [shape = 'u8[512]{0}', space=smem, size = 0x200, scoped, tag = 'output window, operand 0, single buffered']
    %6 = vsyncpa [#allocation3], 0
    %7 = vsyncpa [#allocation4], 0
    // Predicated region
    $region2: #{tpu_custom_call.1} parent=1 // pred_check
      _
    $region3: #{tpu_custom_call.1} parent=1 // pred_check_branch
      %9 = sbr.rel (0) target = $region5
    $region4: #{tpu_custom_call.1} parent=1 // pred_region
      %s11 = ssub.s32 256, 256
      %12 = vsyncadd [#allocation3], %s11
      %s13 = sshll.u32 [#allocation2], 4
      %s14 = int_to_ptr.vmem [resolvable:$true] %s13
      %19 = dma.hbm_to_vmem [thread:$0]  %s0, 256, %s14, [#allocation3], 128, 128, 8
    $region5: #{tpu_custom_call.1} parent=1 // pred_fallthru
      _
    // Predicated region
    $region6: #{tpu_custom_call.1} parent=1 // pred_check
      _
    $region7: #{tpu_custom_call.1} parent=1 // pred_check_branch
      %21 = sbr.rel (0) target = $region9
    $region8: #{tpu_custom_call.1} parent=1 // pred_region
      %22 = dma.done [#allocation3], 256
    $region9: #{tpu_custom_call.1} parent=1 // pred_fallthru
      _
    %v23 = vld [vmem:[#allocation2] sm:$0xff]
    %v24 = vld [vmem:[#allocation2 + $0x8] sm:$0xff]
    %v25 = vadd.f32 %v23, %v24
    %26 = vadd.xlane.f32.xlu0 %v25
    %v27 = vpop.xlane.xlu0 %26
    %v28 = vrot.slane %v27, 4
    %v29 = vadd.f32 %v27, %v28
    %v30 = vrot.slane %v29, 2
    %v31 = vadd.f32 %v29, %v30
    %v32 = vrot.slane %v31, 1
    %v33 = vadd.f32 %v31, %v32
    %s34 = vtos %v33
    %s35 = smul.f32 %s34, 0.00048828125
    %s36 = scalar_lea.smem [#allocation5], 0
    %37 = sst [smem:[%s36]] %s35
    // Predicated region
    $region10: #{tpu_custom_call.1} parent=1 // pred_check
      _
    $region11: #{tpu_custom_call.1} parent=1 // pred_check_branch
      %39 = sbr.rel (0) target = $region13
    $region12: #{tpu_custom_call.1} parent=1 // pred_region
      %s41 = ssub.s32 16, 16
      %42 = vsyncadd [#allocation4], %s41
      %45 = dma.smem_to_hbm [#allocation5], 16, %s1, [#allocation4]
    $region13: #{tpu_custom_call.1} parent=1 // pred_fallthru
      _
    // Predicated region
    $region14: #{tpu_custom_call.1} parent=1 // pred_check
      _
    $region15: #{tpu_custom_call.1} parent=1 // pred_check_branch
      %47 = sbr.rel (0) target = $region17
    $region16: #{tpu_custom_call.1} parent=1 // pred_region
      %48 = dma.done [#allocation4], 16
    $region17: #{tpu_custom_call.1} parent=1 // pred_fallthru
      _
    %49 = sfence
    %50 = vsyncpa [#allocation3], 1
    %51 = vsyncpa [#allocation4], 1

</llo_original>
